<compile_context>
chip_gen: v5e
topology: v5e:2x2
jax: 0.10.0
libtpu: 0.0.40
codegen_flags: <defaults>
</compile_context>

<pallas_src>
import functools

import jax
import jax.numpy as jnp
from jax.experimental import pallas as pl
from jax.experimental.pallas import tpu as pltpu


def _nce_kernel(pred_ref, labels_ref, out_ref, *, n_rows, tn, num_classes):
    i = pl.program_id(0)

    logits = pred_ref[...].astype(jnp.float32)                 # (tn, C)
    labels = labels_ref[...]                                   # (tn, 1) int32

    # log_softmax pieces (no full (tn, C) logp / one-hot materialized):
    #   logp = logits - m - lse
    #   num  = -sum_c onehot * logp = (m + lse) - logits[label]
    #   den  = -sum_c logp          = C*(m + lse) - sum_c logits
    m = jnp.max(logits, axis=1, keepdims=True)                 # (tn, 1)
    cls_ids = jax.lax.broadcasted_iota(jnp.int32, logits.shape, 1)
    picked = jnp.sum(jnp.where(cls_ids == labels, logits, 0.0),
                     axis=1, keepdims=True)                    # (tn, 1)
    row_sum = jnp.sum(logits, axis=1, keepdims=True)           # (tn, 1)
    lse = jnp.log(jnp.sum(jnp.exp(logits - m), axis=1, keepdims=True))  # (tn, 1)

    mlse = m + lse
    num = mlse - picked                                        # (tn, 1)
    den = float(num_classes) * mlse - row_sum                  # (tn, 1)

    # EUP reciprocal + one Newton step to recover ~f32 accuracy (keeps VALU free).
    r = pl.reciprocal(den, approx=True)
    r = r * (2.0 - den * r)
    nce = num * r                                              # (tn, 1)

    # Mask tail rows of the last (partial) tile (OOB padding rows -> 0).
    row_ids = i * tn + jax.lax.broadcasted_iota(jnp.int32, nce.shape, 0)
    nce = jnp.where(row_ids < n_rows, nce, 0.0)

    tile_sum = jnp.sum(nce)
    out_ref[...] = jnp.full(out_ref.shape, tile_sum, dtype=jnp.float32)


def _pick_tile_rows(N, C, itemsize):
    """Row-tile size from HBM-traffic and VMEM budgets (lane-padding aware)."""
    lane = 128
    c_pad = ((C + lane - 1) // lane) * lane
    row_hbm_bytes = itemsize * C          # bytes streamed from HBM per row
    # ~3 live f32 full-tile temporaries (upcast logits, iota/compare-select, exp).
    row_f32_vmem_bytes = 3 * 4 * c_pad

    # ~2 MiB of HBM traffic per grid step amortizes the ~0.35us per-step overhead.
    tn_hbm = (2 * 1024 * 1024) // max(row_hbm_bytes, 1)
    # Keep the full-tile f32 temporaries under ~8 MiB so they plus the
    # double-buffered input tiles stay well inside a 32 MiB scoped-VMEM limit
    # (safe on v7x's 64 MiB physical VMEM as well).
    tn_vmem = (8 * 1024 * 1024) // max(row_f32_vmem_bytes, 1)

    tn = min(tn_hbm, tn_vmem)
    tn = max(8, (tn // 8) * 8)
    n_pad8 = ((N + 7) // 8) * 8
    return min(tn, n_pad8)


# TODO(synk): add a class-axis grid with online max/lse/sum accumulation for
# vocab-scale C (>= ~64k) where even an 8-row tile exceeds the VMEM budget.
@functools.partial(jax.jit, static_argnames=("num_classes", "scale"))
def normalized_cross_entropy(pred, labels, *, num_classes, scale=1.0):
    """Pallas-TPU NormalizedCrossEntropy.

    pred:   (N, C) float logits (f32 or bf16)
    labels: (N,)   int class indices in [0, num_classes)
    returns scalar float32: scale * mean_i nce_i
    """
    N, C = pred.shape
    assert C == num_classes
    labels2d = labels.astype(jnp.int32).reshape(N, 1)

    tn = _pick_tile_rows(N, C, pred.dtype.itemsize)
    grid = pl.cdiv(N, tn)

    kernel = functools.partial(_nce_kernel, n_rows=N, tn=tn, num_classes=C)

    partials = pl.pallas_call(
        kernel,
        out_shape=jax.ShapeDtypeStruct((grid, 1, 128), jnp.float32),
        grid_spec=pltpu.PrefetchScalarGridSpec(
            num_scalar_prefetch=0,
            grid=(grid,),
            in_specs=[
                pl.BlockSpec((tn, C), lambda i: (i, 0)),
                pl.BlockSpec((tn, 1), lambda i: (i, 0)),
            ],
            out_specs=pl.BlockSpec((1, 1, 128), lambda i: (i, 0, 0)),
        ),
        compiler_params=pltpu.CompilerParams(
            dimension_semantics=("parallel",),
            vmem_limit_bytes=32 * 1024 * 1024,
        ),
    )(pred, labels2d)

    total = jnp.sum(partials[:, 0, 0])
    return (scale * total / N).astype(jnp.float32)


def _reference(pred, labels, num_classes, scale=1.0):
    logp = jax.nn.log_softmax(pred.astype(jnp.float32), axis=1)
    onehot = jax.nn.one_hot(labels, num_classes, dtype=jnp.float32)
    nce = (-jnp.sum(onehot * logp, axis=1)) / (-jnp.sum(logp, axis=1))
    return scale * jnp.mean(nce)


if __name__ == "__main__":
    key = jax.random.PRNGKey(0)

    # Small shapes consistent with the module: a batch of logits over num_classes.
    num_classes = 32
    batch = 8
    scale = 1.0

    kp, kl = jax.random.split(key)
    pred = jax.random.normal(kp, (batch, num_classes), dtype=jnp.float32)
    labels = jax.random.randint(kl, (batch,), 0, num_classes, dtype=jnp.int32)

    out = normalized_cross_entropy(pred, labels,
                                   num_classes=num_classes, scale=scale)
    out = jax.block_until_ready(out)
    ref = _reference(pred, labels, num_classes, scale)
    assert jnp.allclose(out, ref, rtol=1e-5, atol=1e-5), (out, ref)

    # Second case: ragged batch (tail-masking path) and non-unit scale.
    n2, c2, s2 = 37, 10, 2.5
    kp2, kl2 = jax.random.split(kl)
    pred2 = jax.random.normal(kp2, (n2, c2), dtype=jnp.float32)
    labels2 = jax.random.randint(kl2, (n2,), 0, c2, dtype=jnp.int32)
    out2 = jax.block_until_ready(
        normalized_cross_entropy(pred2, labels2, num_classes=c2, scale=s2))
    ref2 = _reference(pred2, labels2, c2, s2)
    assert jnp.allclose(out2, ref2, rtol=1e-5, atol=1e-5), (out2, ref2)

    # Third case: bf16 logits, larger tile count (exercises multi-step grid).
    n3, c3 = 1000, 128
    kp3, kl3 = jax.random.split(kl2)
    pred3 = jax.random.normal(kp3, (n3, c3), dtype=jnp.bfloat16)
    labels3 = jax.random.randint(kl3, (n3,), 0, c3, dtype=jnp.int32)
    out3 = jax.block_until_ready(
        normalized_cross_entropy(pred3, labels3, num_classes=c3, scale=1.0))
    ref3 = _reference(pred3, labels3, c3, 1.0)
    assert jnp.allclose(out3, ref3, rtol=2e-2, atol=2e-2), (out3, ref3)

    print("KERNEL_OK")
</pallas_src>

<mosaic_0001>
module attributes {stable_mosaic.version = 11 : i64} {
  func.func @_nce_kernel(%arg0: i32, %arg1: memref<8x32xf32, #tpu.memory_space<vmem>>, %arg2: memref<8x1xi32, #tpu.memory_space<vmem>>, %arg3: memref<1x1x128xf32, #tpu.memory_space<vmem>>) attributes {dimension_semantics = [#tpu.dimension_semantics<parallel>], iteration_bounds = array<i64: 1>, scalar_prefetch = 0 : i64, scratch_operands = 0 : i64, tpu.core_type = #tpu.core_type<tc>, window_params = [{transform_indices = @transform_0, window_bounds = array<i64: 8, 32>}, {transform_indices = @transform_1, window_bounds = array<i64: 8, 1>}, {transform_indices = @transform_2, window_bounds = array<i64: 1, 1, 128>}]} {
    %c0 = arith.constant 0 : index
    %c0_0 = arith.constant 0 : index
    %0 = vector.load %arg1[%c0, %c0_0] : memref<8x32xf32, #tpu.memory_space<vmem>>, vector<8x32xf32>
    %c0_1 = arith.constant 0 : index
    %c0_2 = arith.constant 0 : index
    %1 = vector.load %arg2[%c0_1, %c0_2] : memref<8x1xi32, #tpu.memory_space<vmem>>, vector<8x1xi32>
    %cst = arith.constant dense<0xFF800000> : vector<8xf32>
    %2 = vector.multi_reduction <maximumf>, %0, %cst [1] : vector<8x32xf32> to vector<8xf32>
    %3 = vector.shape_cast %2 : vector<8xf32> to vector<8x1xf32>
    %4 = tpu.iota {dimensions = array<i32: 1>} : vector<8x32xi32>
    %5 = vector.broadcast %1 : vector<8x1xi32> to vector<8x32xi32>
    %6 = arith.cmpi eq, %4, %5 : vector<8x32xi32>
    %cst_3 = arith.constant 0.000000e+00 : f32
    %7 = vector.broadcast %cst_3 : f32 to vector<8x32xf32>
    %8 = arith.select %6, %0, %7 : vector<8x32xi1>, vector<8x32xf32>
    %cst_4 = arith.constant dense<0.000000e+00> : vector<8xf32>
    %9 = vector.multi_reduction <add>, %8, %cst_4 [1] : vector<8x32xf32> to vector<8xf32>
    %10 = vector.shape_cast %9 : vector<8xf32> to vector<8x1xf32>
    %cst_5 = arith.constant dense<0.000000e+00> : vector<8xf32>
    %11 = vector.multi_reduction <add>, %0, %cst_5 [1] : vector<8x32xf32> to vector<8xf32>
    %12 = vector.shape_cast %11 : vector<8xf32> to vector<8x1xf32>
    %13 = vector.broadcast %3 : vector<8x1xf32> to vector<8x32xf32>
    %14 = arith.subf %0, %13 : vector<8x32xf32>
    %15 = math.exp %14 : vector<8x32xf32>
    %cst_6 = arith.constant dense<0.000000e+00> : vector<8xf32>
    %16 = vector.multi_reduction <add>, %15, %cst_6 [1] : vector<8x32xf32> to vector<8xf32>
    %17 = vector.shape_cast %16 : vector<8xf32> to vector<8x1xf32>
    %18 = math.log %17 : vector<8x1xf32>
    %19 = arith.addf %3, %18 : vector<8x1xf32>
    %20 = arith.subf %19, %10 : vector<8x1xf32>
    %cst_7 = arith.constant 3.200000e+01 : f32
    %21 = vector.broadcast %cst_7 : f32 to vector<8x1xf32>
    %22 = arith.mulf %21, %19 : vector<8x1xf32>
    %23 = arith.subf %22, %12 : vector<8x1xf32>
    %24 = tpu.reciprocal %23 {approx = true} : vector<8x1xf32> -> vector<8x1xf32>
    %25 = arith.mulf %23, %24 : vector<8x1xf32>
    %cst_8 = arith.constant 2.000000e+00 : f32
    %26 = vector.broadcast %cst_8 : f32 to vector<8x1xf32>
    %27 = arith.subf %26, %25 : vector<8x1xf32>
    %28 = arith.mulf %24, %27 : vector<8x1xf32>
    %29 = arith.mulf %20, %28 : vector<8x1xf32>
    %c8_i32 = arith.constant 8 : i32
    %30 = arith.muli %arg0, %c8_i32 : i32
    %31 = tpu.iota {dimensions = array<i32: 0>} : vector<8x1xi32>
    %32 = vector.broadcast %30 : i32 to vector<8x1xi32>
    %33 = arith.addi %32, %31 : vector<8x1xi32>
    %c8_i32_9 = arith.constant 8 : i32
    %34 = vector.broadcast %c8_i32_9 : i32 to vector<8x1xi32>
    %35 = arith.cmpi slt, %33, %34 : vector<8x1xi32>
    %cst_10 = arith.constant 0.000000e+00 : f32
    %36 = vector.broadcast %cst_10 : f32 to vector<8x1xf32>
    %37 = arith.select %35, %29, %36 : vector<8x1xi1>, vector<8x1xf32>
    %38 = vector.shape_cast %37 : vector<8x1xf32> to vector<1x8x1xf32>
    %cst_11 = arith.constant dense<0.000000e+00> : vector<1xf32>
    %39 = vector.multi_reduction <add>, %38, %cst_11 [1, 2] : vector<1x8x1xf32> to vector<1xf32>
    %40 = vector.shape_cast %39 : vector<1xf32> to vector<1x1x1xf32>
    %41 = vector.extract %40[0, 0, 0] : f32 from vector<1x1x1xf32>
    %42 = vector.broadcast %41 : f32 to vector<1x1x128xf32>
    %c0_12 = arith.constant 0 : index
    %c0_13 = arith.constant 0 : index
    %c0_14 = arith.constant 0 : index
    %43 = vector.load %arg3[%c0_12, %c0_13, %c0_14] : memref<1x1x128xf32, #tpu.memory_space<vmem>>, vector<1x1x128xf32>
    tpu.vector_store %arg3[%c0_12, %c0_13, %c0_14], %42 {strides = array<i32>} : memref<1x1x128xf32, #tpu.memory_space<vmem>>, vector<1x1x128xf32>,
    return
  }
  func.func @transform_0(%arg0: i32) -> (i32, i32) {
    %c0_i32 = arith.constant 0 : i32
    %c0_i32_0 = arith.constant 0 : i32
    return %arg0, %c0_i32 : i32, i32
  }
  func.func @transform_1(%arg0: i32) -> (i32, i32) {
    %c0_i32 = arith.constant 0 : i32
    %c0_i32_0 = arith.constant 0 : i32
    return %arg0, %c0_i32 : i32, i32
  }
  func.func @transform_2(%arg0: i32) -> (i32, i32, i32) {
    %c0_i32 = arith.constant 0 : i32
    %c0_i32_0 = arith.constant 0 : i32
    %c0_i32_1 = arith.constant 0 : i32
    return %arg0, %c0_i32, %c0_i32_0 : i32, i32, i32
  }
}

</mosaic_0001>

<llo_original>
// kernel: normalized_cross_entropy.1
$region0: #{normalized_cross_entropy.1}
  #allocation0 [shape = 'u32[]', space=smem, size = 0x4, offset = 0x4, fixed_abs, tag = 'smem constant byte address 0x4 - core index']
  #allocation1 [shape = 'u32[72,128]{1,0:T(1,128)}', space=vmem, size = 0x9000, scoped, tag = 'internal scratch']
  %s0 = inlined_call_operand.vmem [shape: f32[8,32], index: 0, kind: input, shape index: {}]
  %s1 = inlined_call_operand.vmem [shape: s32[8,1], index: 1, kind: input, shape index: {}]
  %s2 = inlined_call_operand.vmem [shape: f32[1,1,128], index: 2, kind: output, shape index: {}]
  %s3 = sld [smem:[#allocation0]]
  $region18: #{normalized_cross_entropy.1} parent=0
    _
  %s5 = ssub.s32 1, %s3
  %s6 = scalar_select 0, %s5, %s3
  // Predicated region
  $region2: #{normalized_cross_entropy.1} parent=0 // pred_check
    _
  $region3: #{normalized_cross_entropy.1} parent=0 // pred_check_branch
    %8 = sbr.rel (0) target = $region5
  $region4: #{normalized_cross_entropy.1} parent=0 // pred_region
    _
  $region5: #{normalized_cross_entropy.1} parent=0 // pred_fallthru
    _
  // Predicated region
  $region6: #{normalized_cross_entropy.1} parent=0 // pred_check
    _
  $region7: #{normalized_cross_entropy.1} parent=0 // pred_check_branch
    %10 = sbr.rel (0) target = $region9
  $region8: #{normalized_cross_entropy.1} parent=0 // pred_region
    _
  $region9: #{normalized_cross_entropy.1} parent=0 // pred_fallthru
    _
  %v11 = vld [vmem:[%s0] sm:$0xff]
  %v12 = vld [vmem:[%s1] sm:$0xff]
  %vm13 = vcmask 261120
  %v14 = vsel %vm13, %v11, -inf
  %15 = vmax.xlane.f32.xlu0 %v14
  %v16 = vpop.xlane.xlu0 %15
  %v17 = vlaneseq
  %v18 = vand.u32 %v17, 127
  %19 = vset.pattern.permute.xlu0 0
  %20 = vperm.xlu0 %19, %v12
  %v21 = vpop.permute.xlu0 %20
  %vm22 = vcmp.eq.s32.totalorder %v18, %v21
  %v23 = vsel %vm22, %v11, 0.0
  %v24 = vsel %vm13, %v23, 0.0
  %25 = vadd.xlane.f32.xlu0 %v24
  %v26 = vpop.xlane.xlu0 %25
  %v27 = vsel %vm13, %v11, 0.0
  %28 = vadd.xlane.f32.xlu0 %v27
  %v29 = vpop.xlane.xlu0 %28
  %v30 = vsub.f32 %v11, %v16
  %v31 = vmul.f32 %v30, 1.442695
  %v32 = vpow.pop %v31
  %v33 = vsel %vm13, %v32, 0.0
  %34 = vadd.xlane.f32.xlu0 %v33
  %v35 = vpop.xlane.xlu0 %34
  %v36 = vlog2.pop %v35
  %v37 = vmul.f32 %v36, 0.6931472
  %v38 = vadd.f32 %v16, %v37
  %v39 = vsub.f32 %v38, %v26
  %v40 = vmul.f32 %v38, 32.0
  %v41 = vsub.f32 %v40, %v29
  %v42 = vrcp.pop %v41
  %v43 = vmul.f32 %v41, %v42
  %v44 = vsub.f32 2.0, %v43
  %v45 = vmul.f32 %v42, %v44
  %v46 = vmul.f32 %v39, %v45
  %s47 = smul.u32 0, 8
  %v48 = vlaneseq
  %v49 = vshrl.u32 %v48, 7
  %v50 = vstv %s47
  %v51 = vadd.s32 %v50, %v49
  %vm52 = vcmp.lt.s32.totalorder %v51, 8
  %v53 = vsel %vm52, %v46, 0.0
  %vm54 = vcmask 7168
  %v55 = vsel %vm54, %v53, 0.0
  %56 = vadd.xlane.f32.xlu0 %v55
  %v57 = vpop.xlane.xlu0 %56
  %v58 = vrot.slane %v57, 4
  %v59 = vadd.f32 %v57, %v58
  %v60 = vrot.slane %v59, 2
  %v61 = vadd.f32 %v59, %v60
  %v62 = vrot.slane %v61, 1
  %v63 = vadd.f32 %v61, %v62
  %s64 = vtos %v63
  %v65 = vstv %s64
  %66 = vst [vmem:[%s2] sm:$0x1] %v65
  // Predicated region
  $region10: #{normalized_cross_entropy.1} parent=0 // pred_check
    _
  $region11: #{normalized_cross_entropy.1} parent=0 // pred_check_branch
    %68 = sbr.rel (0) target = $region13
  $region12: #{normalized_cross_entropy.1} parent=0 // pred_region
    _
  $region13: #{normalized_cross_entropy.1} parent=0 // pred_fallthru
    _
  // Predicated region
  $region14: #{normalized_cross_entropy.1} parent=0 // pred_check
    _
  $region15: #{normalized_cross_entropy.1} parent=0 // pred_check_branch
    %70 = sbr.rel (0) target = $region17
  $region16: #{normalized_cross_entropy.1} parent=0 // pred_region
    _
  $region17: #{normalized_cross_entropy.1} parent=0 // pred_fallthru
    _

</llo_original>
